<compile_context>
chip_gen: v5e
topology: v5e:2x2
jax: 0.10.0
libtpu: 0.0.40
codegen_flags: <defaults>
</compile_context>

<pallas_src>
import functools

import numpy as np
import jax
import jax.numpy as jnp
from jax.experimental import pallas as pl
from jax.experimental.pallas import tpu as pltpu


def _round_up(a, m):
    return ((a + m - 1) // m) * m


def _cdiv(a, b):
    return -(-a // b)


# -----------------------------------------------------------------------------
# Filter construction (glue, mirrors ConvSinc.__init__ + forward exactly)
# -----------------------------------------------------------------------------
def make_sinc_filters(low_hz_, band_hz_, kernel_size, sample_rate):
    """Builds the (C, 1, K) band-pass filter bank exactly like ConvSinc.forward."""
    if kernel_size % 2 != 1:
        raise ValueError("kernel_size must be odd for the sinc construction")
    C = low_hz_.shape[0]
    n = (kernel_size - 1) / 2.0
    # n_ = 2*pi*arange(-n, 0) / sample_rate, shape (1, K//2)
    n_ = (2.0 * jnp.pi * jnp.arange(-n, 0.0, dtype=jnp.float32)[None, :]
          / float(sample_rate))
    # torch.hamming_window(kernel_size // 2) with default periodic=True
    M = kernel_size // 2
    idx = jnp.arange(M, dtype=jnp.float32)
    window_ = 0.54 - 0.46 * jnp.cos(2.0 * jnp.pi * idx / M)

    low = jnp.abs(low_hz_)                                             # (C, 1)
    high = jnp.clip(low + jnp.abs(band_hz_), 0.0, sample_rate / 2.0)   # (C, 1)
    band = (high - low)[:, 0]                                          # (C,)

    f_times_t_low = low @ n_                                           # (C, M)
    f_times_t_high = high @ n_                                         # (C, M)

    band_pass_left = (2.0 * ((jnp.sin(f_times_t_high) - jnp.sin(f_times_t_low))
                             / n_) * window_)                          # (C, M)
    band_pass_center = 2.0 * band[:, None]                             # (C, 1)
    band_pass_right = jnp.flip(band_pass_left, axis=1)                 # (C, M)

    band_pass = jnp.concatenate(
        [band_pass_left, band_pass_center, band_pass_right], axis=1)   # (C, K)
    # NOTE: mirrors PyTorch exactly; band == 0 would divide by zero there too.
    band_pass = band_pass / (2.0 * band[:, None])
    return band_pass.reshape(C, 1, kernel_size)


# -----------------------------------------------------------------------------
# Pallas kernels
# -----------------------------------------------------------------------------
def _conv1d_vpu_kernel(x_ref, w_ref, o_ref, *, K, TL):
    """Small-C fast path: K broadcast-FMA accumulations on the VPU (no slab).

    x_ref: (1, 1, L_x_pad) f32 — full padded signal row for this batch element;
           constant index_map along the tile axis, so it is DMAed once per row.
    w_ref: (C, K) f32 filter bank, resident for the whole kernel.
    o_ref: (1, C, TL) f32 lane-dense output tile (last tile masked by Pallas).
    """
    j = pl.program_id(1)
    start = pl.multiple_of(j * TL, 128)               # 128-aligned window start
    w = w_ref[...]                                    # (C, K), tiny
    x_win = x_ref[0, :, pl.ds(start, TL + K - 1)]     # (1, TL + K - 1)
    C = w_ref.shape[0]
    acc = jnp.zeros((C, TL), jnp.float32)
    for k in range(K):
        # (C,1) * (1,TL) broadcast FMA; the per-tap lane shift is the only
        # cross-lane work — no (K, TL) slab is ever materialized.
        acc = acc + w[:, k:k + 1] * x_win[:, k:k + TL]
    o_ref[...] = acc[None].astype(o_ref.dtype)


def _conv1d_mxu_kernel(x_ref, w_ref, o_ref, *, TL, NP, G):
    """Large-C path: <=128-row phase slab + grouped lane-aligned MXU matmuls.

    x_ref: (1, 1, L_x_pad) f32 resident signal row.
    w_ref: (C, K_w) bf16, K_w = round_up(K,8) if K<=128 else 128*G (zero-padded
           tap columns only — no 128-padding of the slab contraction).
    o_ref: (1, C, TL) f32 lane-dense output tile.
    """
    j = pl.program_id(1)
    start = pl.multiple_of(j * TL, 128)
    TW = TL + 128 * (G - 1)                           # slab lane width
    x_win = x_ref[0, :, pl.ds(start, TW + NP - 1)]    # (1, TW + NP - 1), once
    # Phase slab: NP (<=128) shifted copies of the window.  Tap k = 128*g + p
    # reuses phase row p through a lane-aligned column offset 128*g below.
    rows = [x_win[:, p:p + TW] for p in range(NP)]    # each (1, TW)
    slab = jnp.concatenate(rows, axis=0).astype(jnp.bfloat16)   # (NP, TW) bf16
    C = w_ref.shape[0]
    acc = jnp.zeros((C, TL), jnp.float32)
    for g in range(G):
        wg = w_ref[:, 128 * g:128 * g + NP]           # (C, NP) bf16
        pg = slab[:, 128 * g:128 * g + TL]            # (NP, TL), lane-aligned
        acc = acc + jnp.dot(wg, pg, preferred_element_type=jnp.float32)
    o_ref[...] = acc[None].astype(o_ref.dtype)


# -----------------------------------------------------------------------------
# Wrapper (valid conv, stride=1, dilation=1, groups=1, no bias)
# -----------------------------------------------------------------------------
def conv1d_pallas(x2d, w2d, *, tile_l=2048, mxu_min_channels=33):
    """x2d: (B, L) f32, w2d: (C, K) f32 -> (B, C, L - K + 1) f32."""
    B, L = x2d.shape
    C, K = w2d.shape
    L_out = L - K + 1
    assert L_out >= 1, "kernel longer than signal"

    # Lane-dense tile length (multiple of 128), sized to split L_out evenly.
    tile_l = max(128, tile_l)
    num_j = _cdiv(L_out, tile_l)
    TL = min(_round_up(_cdiv(L_out, num_j), 128), _round_up(L_out, 128))
    num_j = _cdiv(L_out, TL)
    # Keep >= 2 total grid steps when possible so both v7x TensorCores get work.
    while B * num_j < 2 and TL > 128:
        TL = max(128, _round_up(TL // 2, 128))
        num_j = _cdiv(L_out, TL)
    L_out_pad = num_j * TL

    use_mxu = C >= mxu_min_channels
    if use_mxu:
        NP = _round_up(min(K, 128), 8)        # phase rows (<=128, sublane mult)
        G = _cdiv(K, 128)                     # number of 128-tap groups
        K_w = NP if G == 1 else 128 * G       # W columns (zero-padded taps)
        halo = 128 * (G - 1) + NP - 1
        w_in = jnp.zeros((C, K_w), jnp.bfloat16).at[:, :K].set(
            w2d.astype(jnp.bfloat16))
        kernel = functools.partial(_conv1d_mxu_kernel, TL=TL, NP=NP, G=G)
    else:
        halo = K - 1
        w_in = w2d.astype(jnp.float32)
        kernel = functools.partial(_conv1d_vpu_kernel, K=K, TL=TL)

    # Pad x so the last tile's halo window stays in-bounds; the zeros only feed
    # output positions that Pallas masks on writeback.  x is C-times smaller
    # than the output, so this small wrapper copy is acceptable.
    L_x_pad = L_out_pad + halo
    x_pad = jnp.pad(x2d.astype(jnp.float32)[:, None, :],
                    ((0, 0), (0, 0), (0, L_x_pad - L)))

    return pl.pallas_call(
        kernel,
        out_shape=jax.ShapeDtypeStruct((B, C, L_out), jnp.float32),
        grid=(B, num_j),
        in_specs=[
            # Signal row: constant block index along j -> fetched once per batch
            # row, VMEM-resident across all of its output tiles.
            pl.BlockSpec((1, 1, L_x_pad), lambda b, j: (b, 0, 0)),
            # Filter bank: resident for the whole kernel.
            pl.BlockSpec(w_in.shape, lambda b, j: (0, 0)),
        ],
        out_specs=pl.BlockSpec((1, C, TL), lambda b, j: (b, 0, j)),
        compiler_params=pltpu.CompilerParams(
            dimension_semantics=("parallel", "parallel")),
    )(x_pad, w_in)


# -----------------------------------------------------------------------------
# Full ConvSinc forward
# -----------------------------------------------------------------------------
def conv_sinc_forward(x, low_hz_, band_hz_, kernel_size, sample_rate, *,
                      tile_l=2048):
    """x: (B, 1, L) NCL float32 -> (B, out_channels, L - K + 1)."""
    filters = make_sinc_filters(low_hz_, band_hz_, kernel_size, sample_rate)
    return conv1d_pallas(x[:, 0, :], filters[:, 0, :], tile_l=tile_l)


if __name__ == "__main__":
    SR = 16000
    key = jax.random.PRNGKey(0)
    k1, k2 = jax.random.split(key)

    # ---- Config 1: small C (demo) -> exact-f32 VPU broadcast-FMA fast path ----
    C1, K1, B1, L1 = 8, 9, 2, 2200
    hz1 = np.linspace(0, SR / 2, C1 + 1)
    low1 = jnp.asarray(hz1[:-1], dtype=jnp.float32).reshape(-1, 1)      # (C, 1)
    band1 = jnp.asarray(np.diff(hz1), dtype=jnp.float32).reshape(-1, 1)  # (C, 1)
    x1 = jax.random.normal(k1, (B1, 1, L1), dtype=jnp.float32)

    out1 = jax.block_until_ready(conv_sinc_forward(x1, low1, band1, K1, SR))
    f1 = make_sinc_filters(low1, band1, K1, SR)
    ref1 = jax.lax.conv_general_dilated(
        x1, f1, window_strides=(1,), padding="VALID",
        dimension_numbers=("NCH", "OIH", "NCH"),
        precision=jax.lax.Precision.HIGHEST)
    assert out1.shape == (B1, C1, L1 - K1 + 1)
    assert jnp.allclose(out1, ref1, atol=1e-3, rtol=1e-3), "VPU path mismatch"

    # ---- Config 2: larger C -> phase-slab MXU path (bf16 operands, f32 acc) ----
    C2, K2, B2, L2 = 64, 65, 2, 1200
    hz2 = np.linspace(0, SR / 2, C2 + 1)
    low2 = jnp.asarray(hz2[:-1], dtype=jnp.float32).reshape(-1, 1)
    band2 = jnp.asarray(np.diff(hz2), dtype=jnp.float32).reshape(-1, 1)
    x2 = jax.random.normal(k2, (B2, 1, L2), dtype=jnp.float32)

    out2 = jax.block_until_ready(conv_sinc_forward(x2, low2, band2, K2, SR))
    f2 = make_sinc_filters(low2, band2, K2, SR)
    # Reference with identically bf16-rounded operands (accumulation stays f32),
    # so the comparison remains tight despite the bf16 MXU feed.
    x2_bf = x2.astype(jnp.bfloat16).astype(jnp.float32)
    f2_bf = f2.astype(jnp.bfloat16).astype(jnp.float32)
    ref2 = jax.lax.conv_general_dilated(
        x2_bf, f2_bf, window_strides=(1,), padding="VALID",
        dimension_numbers=("NCH", "OIH", "NCH"),
        precision=jax.lax.Precision.HIGHEST)
    assert out2.shape == (B2, C2, L2 - K2 + 1)
    assert jnp.allclose(out2, ref2, atol=2e-3, rtol=2e-3), "MXU path mismatch"

    print("KERNEL_OK")
</pallas_src>

<mosaic_0001>
module attributes {stable_mosaic.version = 11 : i64} {
  func.func @_conv1d_vpu_kernel(%arg0: i32, %arg1: i32, %arg2: memref<1x1x2312xf32, #tpu.memory_space<vmem>>, %arg3: memref<8x9xf32, #tpu.memory_space<vmem>>, %arg4: memref<1x8x1152xf32, #tpu.memory_space<vmem>>) attributes {dimension_semantics = [#tpu.dimension_semantics<parallel>, #tpu.dimension_semantics<parallel>], iteration_bounds = array<i64: 2, 2>, scalar_prefetch = 0 : i64, scratch_operands = 0 : i64, tpu.core_type = #tpu.core_type<tc>, window_params = [{transform_indices = @transform_0, window_bounds = array<i64: 1, 1, 2312>}, {pipeline_mode = #tpu.pipeline_mode<synchronous>, transform_indices = @transform_1, window_bounds = array<i64: 8, 9>}, {transform_indices = @transform_2, window_bounds = array<i64: 1, 8, 1152>}]} {
    %c1152_i32 = arith.constant 1152 : i32
    %0 = arith.muli %arg1, %c1152_i32 : i32
    %1 = tpu.assume_multiple %0, 128 : i32
    %c0 = arith.constant 0 : index
    %c0_0 = arith.constant 0 : index
    %2 = vector.load %arg3[%c0, %c0_0] : memref<8x9xf32, #tpu.memory_space<vmem>>, vector<8x9xf32>
    %c0_1 = arith.constant 0 : index
    %c0_2 = arith.constant 0 : index
    %3 = arith.index_cast %1 : i32 to index
    %4 = vector.load %arg2[%c0_1, %c0_2, %3] : memref<1x1x2312xf32, #tpu.memory_space<vmem>>, vector<1x1x1160xf32>
    %5 = vector.shape_cast %4 : vector<1x1x1160xf32> to vector<1x1160xf32>
    %cst = arith.constant 0.000000e+00 : f32
    %6 = vector.broadcast %cst : f32 to vector<8x1152xf32>
    %7 = vector.extract_strided_slice %2 {offsets = [0, 0], sizes = [8, 1], strides = [1, 1]} : vector<8x9xf32> to vector<8x1xf32>
    %8 = vector.extract_strided_slice %5 {offsets = [0, 0], sizes = [1, 1152], strides = [1, 1]} : vector<1x1160xf32> to vector<1x1152xf32>
    %9 = vector.broadcast %7 : vector<8x1xf32> to vector<8x1152xf32>
    %10 = vector.broadcast %8 : vector<1x1152xf32> to vector<8x1152xf32>
    %11 = arith.mulf %9, %10 : vector<8x1152xf32>
    %12 = arith.addf %6, %11 : vector<8x1152xf32>
    %13 = vector.extract_strided_slice %2 {offsets = [0, 1], sizes = [8, 1], strides = [1, 1]} : vector<8x9xf32> to vector<8x1xf32>
    %14 = vector.extract_strided_slice %5 {offsets = [0, 1], sizes = [1, 1152], strides = [1, 1]} : vector<1x1160xf32> to vector<1x1152xf32>
    %15 = vector.broadcast %13 : vector<8x1xf32> to vector<8x1152xf32>
    %16 = vector.broadcast %14 : vector<1x1152xf32> to vector<8x1152xf32>
    %17 = arith.mulf %15, %16 : vector<8x1152xf32>
    %18 = arith.addf %12, %17 : vector<8x1152xf32>
    %19 = vector.extract_strided_slice %2 {offsets = [0, 2], sizes = [8, 1], strides = [1, 1]} : vector<8x9xf32> to vector<8x1xf32>
    %20 = vector.extract_strided_slice %5 {offsets = [0, 2], sizes = [1, 1152], strides = [1, 1]} : vector<1x1160xf32> to vector<1x1152xf32>
    %21 = vector.broadcast %19 : vector<8x1xf32> to vector<8x1152xf32>
    %22 = vector.broadcast %20 : vector<1x1152xf32> to vector<8x1152xf32>
    %23 = arith.mulf %21, %22 : vector<8x1152xf32>
    %24 = arith.addf %18, %23 : vector<8x1152xf32>
    %25 = vector.extract_strided_slice %2 {offsets = [0, 3], sizes = [8, 1], strides = [1, 1]} : vector<8x9xf32> to vector<8x1xf32>
    %26 = vector.extract_strided_slice %5 {offsets = [0, 3], sizes = [1, 1152], strides = [1, 1]} : vector<1x1160xf32> to vector<1x1152xf32>
    %27 = vector.broadcast %25 : vector<8x1xf32> to vector<8x1152xf32>
    %28 = vector.broadcast %26 : vector<1x1152xf32> to vector<8x1152xf32>
    %29 = arith.mulf %27, %28 : vector<8x1152xf32>
    %30 = arith.addf %24, %29 : vector<8x1152xf32>
    %31 = vector.extract_strided_slice %2 {offsets = [0, 4], sizes = [8, 1], strides = [1, 1]} : vector<8x9xf32> to vector<8x1xf32>
    %32 = vector.extract_strided_slice %5 {offsets = [0, 4], sizes = [1, 1152], strides = [1, 1]} : vector<1x1160xf32> to vector<1x1152xf32>
    %33 = vector.broadcast %31 : vector<8x1xf32> to vector<8x1152xf32>
    %34 = vector.broadcast %32 : vector<1x1152xf32> to vector<8x1152xf32>
    %35 = arith.mulf %33, %34 : vector<8x1152xf32>
    %36 = arith.addf %30, %35 : vector<8x1152xf32>
    %37 = vector.extract_strided_slice %2 {offsets = [0, 5], sizes = [8, 1], strides = [1, 1]} : vector<8x9xf32> to vector<8x1xf32>
    %38 = vector.extract_strided_slice %5 {offsets = [0, 5], sizes = [1, 1152], strides = [1, 1]} : vector<1x1160xf32> to vector<1x1152xf32>
    %39 = vector.broadcast %37 : vector<8x1xf32> to vector<8x1152xf32>
    %40 = vector.broadcast %38 : vector<1x1152xf32> to vector<8x1152xf32>
    %41 = arith.mulf %39, %40 : vector<8x1152xf32>
    %42 = arith.addf %36, %41 : vector<8x1152xf32>
    %43 = vector.extract_strided_slice %2 {offsets = [0, 6], sizes = [8, 1], strides = [1, 1]} : vector<8x9xf32> to vector<8x1xf32>
    %44 = vector.extract_strided_slice %5 {offsets = [0, 6], sizes = [1, 1152], strides = [1, 1]} : vector<1x1160xf32> to vector<1x1152xf32>
    %45 = vector.broadcast %43 : vector<8x1xf32> to vector<8x1152xf32>
    %46 = vector.broadcast %44 : vector<1x1152xf32> to vector<8x1152xf32>
    %47 = arith.mulf %45, %46 : vector<8x1152xf32>
    %48 = arith.addf %42, %47 : vector<8x1152xf32>
    %49 = vector.extract_strided_slice %2 {offsets = [0, 7], sizes = [8, 1], strides = [1, 1]} : vector<8x9xf32> to vector<8x1xf32>
    %50 = vector.extract_strided_slice %5 {offsets = [0, 7], sizes = [1, 1152], strides = [1, 1]} : vector<1x1160xf32> to vector<1x1152xf32>
    %51 = vector.broadcast %49 : vector<8x1xf32> to vector<8x1152xf32>
    %52 = vector.broadcast %50 : vector<1x1152xf32> to vector<8x1152xf32>
    %53 = arith.mulf %51, %52 : vector<8x1152xf32>
    %54 = arith.addf %48, %53 : vector<8x1152xf32>
    %55 = vector.extract_strided_slice %2 {offsets = [0, 8], sizes = [8, 1], strides = [1, 1]} : vector<8x9xf32> to vector<8x1xf32>
    %56 = vector.extract_strided_slice %5 {offsets = [0, 8], sizes = [1, 1152], strides = [1, 1]} : vector<1x1160xf32> to vector<1x1152xf32>
    %57 = vector.broadcast %55 : vector<8x1xf32> to vector<8x1152xf32>
    %58 = vector.broadcast %56 : vector<1x1152xf32> to vector<8x1152xf32>
    %59 = arith.mulf %57, %58 : vector<8x1152xf32>
    %60 = arith.addf %54, %59 : vector<8x1152xf32>
    %61 = vector.shape_cast %60 : vector<8x1152xf32> to vector<1x8x1152xf32>
    %c0_3 = arith.constant 0 : index
    %c0_4 = arith.constant 0 : index
    %c0_5 = arith.constant 0 : index
    %62 = vector.load %arg4[%c0_3, %c0_4, %c0_5] : memref<1x8x1152xf32, #tpu.memory_space<vmem>>, vector<1x8x1152xf32>
    tpu.vector_store %arg4[%c0_3, %c0_4, %c0_5], %61 {strides = array<i32>} : memref<1x8x1152xf32, #tpu.memory_space<vmem>>, vector<1x8x1152xf32>,
    return
  }
  func.func @transform_0(%arg0: i32, %arg1: i32) -> (i32, i32, i32) {
    %c0_i32 = arith.constant 0 : i32
    %c0_i32_0 = arith.constant 0 : i32
    %c0_i32_1 = arith.constant 0 : i32
    return %arg0, %c0_i32, %c0_i32_0 : i32, i32, i32
  }
  func.func @transform_1(%arg0: i32, %arg1: i32) -> (i32, i32) {
    %c0_i32 = arith.constant 0 : i32
    %c0_i32_0 = arith.constant 0 : i32
    %c0_i32_1 = arith.constant 0 : i32
    return %c0_i32, %c0_i32_0 : i32, i32
  }
  func.func @transform_2(%arg0: i32, %arg1: i32) -> (i32, i32, i32) {
    %c0_i32 = arith.constant 0 : i32
    %c0_i32_0 = arith.constant 0 : i32
    return %arg0, %c0_i32, %arg1 : i32, i32, i32
  }
}

</mosaic_0001>

<llo_original>
// kernel: tpu_custom_call.1
$region0: #{tpu_custom_call.1}
  #allocation0 [shape = 'u32[]', space=smem, size = 0x4, offset = 0x4, fixed_abs, tag = 'smem constant byte address 0x4 - core index']
  #allocation1 [shape = 'u32[72,128]{1,0:T(1,128)}', space=vmem, size = 0x9000, scoped, tag = 'internal scratch']
  %s0 = inlined_call_operand.hbm [shape: f32[2,1,2312], index: 0, kind: input, shape index: {}]
  %s1 = inlined_call_operand.hbm [shape: f32[8,9], index: 1, kind: input, shape index: {}]
  %s2 = inlined_call_operand.hbm [shape: f32[2,8,2192], index: 2, kind: output, shape index: {}]
  %s3 = sld [smem:[#allocation0]]
  $region49: #{tpu_custom_call.1} parent=0
    _
  %s5 = ssub.s32 1, %s3
  %s6 = scalar_select 0, %s5, %s3
  $region1: #{tpu_custom_call.1} parent=0
    #allocation2 [shape = 'u8[19456]{0}', space=vmem, size = 0x4c00, scoped, tag = 'input window, operand 0']
    #allocation3 [shape = 's32[2]{0}', space=sflag, size = 0x8, scoped, tag = 'scoped memory for tpu_custom_call.1']
    #allocation4 [shape = 's32[2]{0}', space=sflag, size = 0x8, scoped, tag = 'scoped memory for tpu_custom_call.1']
    #allocation5 [shape = 'u8[4096]{0}', space=vmem, size = 0x1000, scoped, tag = 'input window, operand 1, single buffered']
    #allocation6 [shape = 's32[1]{0}', space=sflag, size = 0x4, scoped, tag = 'scoped memory for tpu_custom_call.1']
    #allocation7 [shape = 'u8[73728]{0}', space=vmem, size = 0x12000, scoped, tag = 'output window, operand 0']
    %7 = vsyncpa [#allocation3], 0
    %s8 = scalar_lea.sflag [#allocation3], 1
    %9 = vsyncpa %s8, 0
    %10 = vsyncpa [#allocation6], 0
    %11 = vsyncpa [#allocation4], 0
    %s12 = scalar_lea.sflag [#allocation4], 1
    %13 = vsyncpa %s12, 0
    loop: start=0, step=1, limit=6
    $region2: #{tpu_custom_call.1} parent=1 // loop_pre_header
      _
    $region3: #{tpu_custom_call.1} parent=1 // loop_header
      %s15 = sphi 0, %s19
      %p16 = scmp.ge.s32.totalorder %s15, 6
      %s22 = sphi 0, %s34
      %s23 = sphi 0, %s30
      %s24 = sphi 0, %s22
      %s25 = sphi 0, %s23
      %s26 = sphi 0, %s24
      %s27 = sphi 0, %s25
      %s37 = sphi 0, %s39
      %s40 = sphi 0, %s37
      %s41 = sphi 0, %s40
      %s57 = sphi 0, %s41
      %s61 = sphi 0, %s61
      %s63 = sphi 0, %s61
      %s64 = sphi 0, %s63
      %s78 = sphi 0, %s64
      %s86 = sphi 0, %s88
      %s89 = sphi 0, %s86
      %s90 = sphi 0, %s89
      %s106 = sphi 0, %s90
    $region4: #{tpu_custom_call.1} parent=1 // loop_header_branch
      %18 = sbr.rel (%p16) target = $region8
    $region5: #{tpu_custom_call.1} parent=1 // loop_body
      %s20 = ssub.s32 %s15, 1
      %s21 = ssub.s32 %s15, 2
      %s28 = sadd.s32 1, %s23
      %p29 = scmp.ge.s32.totalorder %s28, 2
      %s30 = scalar_select %p29, 0, %s28
      %s31 = sadd.s32 1, %s22
      %s32 = scalar_select %p29, %s31, %s22
      %p33 = scmp.ge.s32.totalorder %s32, 2
      %s34 = scalar_select %p33, 0, %s32
      %s35 = ssub.s32 %s22, %s34
      %p36 = scmp.eq.s32.totalorder %s35, 0
      %s38 = sadd.s32 %s37, 1
      %s39 = scalar_select %p36, %s37, %s38
      %p42 = pneg %p36
      %p43 = scmp.eq.s32.totalorder %s15, 3
      %p44 = por %p42, %p43
      %p45 = scmp.ne.s32.totalorder %s37, %s40
      %p46 = scmp.eq.s32.totalorder %s15, 0
      %p47 = por %p45, %p46
      %p48 = scmp.ne.s32.totalorder %s37, %s40
      %p49 = scmp.eq.s32.totalorder %s20, 3
      %p50 = por %p48, %p49
      %p51 = scmp.ne.s32.totalorder %s40, %s41
      %p52 = scmp.eq.s32.totalorder %s20, 0
      %p53 = por %p51, %p52
      %p54 = scmp.ne.s32.totalorder %s40, %s41
      %p55 = scmp.eq.s32.totalorder %s21, 3
      %p56 = por %p54, %p55
      %p58 = scmp.ne.s32.totalorder %s41, %s57
      %p59 = scmp.eq.s32.totalorder %s21, 0
      %p60 = por %p58, %p59
      %s62 = sadd.s32 %s61, 1
      %p65 = scmp.eq.s32.totalorder %s15, 3
      %p66 = scmp.ne.s32.totalorder %s61, %s63
      %p67 = scmp.eq.s32.totalorder %s15, 0
      %p68 = por %p66, %p67
      %p69 = scmp.ne.s32.totalorder %s61, %s63
      %p70 = scmp.eq.s32.totalorder %s20, 3
      %p71 = por %p69, %p70
      %p72 = scmp.ne.s32.totalorder %s63, %s64
      %p73 = scmp.eq.s32.totalorder %s20, 0
      %p74 = por %p72, %p73
      %p75 = scmp.ne.s32.totalorder %s63, %s64
      %p76 = scmp.eq.s32.totalorder %s21, 3
      %p77 = por %p75, %p76
      %p79 = scmp.ne.s32.totalorder %s64, %s78
      %p80 = scmp.eq.s32.totalorder %s21, 0
      %p81 = por %p79, %p80
      %s82 = ssub.s32 %s22, %s34
      %s83 = ssub.s32 %s23, %s30
      %s84 = sor.u32 %s82, %s83
      %p85 = scmp.eq.s32.totalorder %s84, 0
      %s87 = sadd.s32 %s86, 1
      %s88 = scalar_select %p85, %s86, %s87
      %p91 = pneg %p85
      %p92 = scmp.eq.s32.totalorder %s15, 3
      %p93 = por %p91, %p92
      %p94 = scmp.ne.s32.totalorder %s86, %s89
      %p95 = scmp.eq.s32.totalorder %s15, 0
      %p96 = por %p94, %p95
      %p97 = scmp.ne.s32.totalorder %s86, %s89
      %p98 = scmp.eq.s32.totalorder %s20, 3
      %p99 = por %p97, %p98
      %p100 = scmp.ne.s32.totalorder %s89, %s90
      %p101 = scmp.eq.s32.totalorder %s20, 0
      %p102 = por %p100, %p101
      %p103 = scmp.ne.s32.totalorder %s89, %s90
      %p104 = scmp.eq.s32.totalorder %s21, 3
      %p105 = por %p103, %p104
      %p107 = scmp.ne.s32.totalorder %s90, %s106
      %p108 = scmp.eq.s32.totalorder %s21, 0
      %p109 = por %p107, %p108
      %p110 = scmp.le.s32.totalorder 1, %s15
      %p111 = scmp.lt.s32.totalorder %s15, 5
      %p112 = pnand %p110, %p111
      %p113 = pneg %p112
      // Predicated region
      $region9: #{tpu_custom_call.1} parent=5 // pred_check
        _
      $region10: #{tpu_custom_call.1} parent=5 // pred_check_branch
        %115 = sbr.rel (%p112) target = $region12
      $region11: #{tpu_custom_call.1} parent=5 // pred_region
        %s116 = ssub.s32 %s15, 1
        // Predicated region
        $region13: #{tpu_custom_call.1} parent=11 // pred_check
          %p117 = pneg %p74
        $region14: #{tpu_custom_call.1} parent=11 // pred_check_branch
          %119 = sbr.rel (%p117) target = $region16
        $region15: #{tpu_custom_call.1} parent=11 // pred_region
          %121 = vsyncadd [#allocation6], 0
          %s123 = sshll.u32 %s1, 4
          %s124 = int_to_ptr.hbm [resolvable:$true] %s123
          %s125 = sshll.u32 [#allocation5], 4
          %s126 = int_to_ptr.vmem [resolvable:$true] %s125
          %128 = dma.hbm_to_vmem [thread:$0]  %s124, 128, %s126, [#allocation6]
        $region16: #{tpu_custom_call.1} parent=11 // pred_fallthru
          _
      $region12: #{tpu_custom_call.1} parent=5 // pred_fallthru
        _
      %p129 = scmp.lt.s32.totalorder %s15, 4
      // Predicated region
      $region17: #{tpu_custom_call.1} parent=5 // pred_check
        %p130 = pneg %p129
      $region18: #{tpu_custom_call.1} parent=5 // pred_check_branch
        %132 = sbr.rel (%p130) target = $region20
      $region19: #{tpu_custom_call.1} parent=5 // pred_region
        // Predicated region
        $region21: #{tpu_custom_call.1} parent=19 // pred_check
          %p133 = pneg %p47
        $region22: #{tpu_custom_call.1} parent=19 // pred_check_branch
          %135 = sbr.rel (%p133) target = $region24
        $region23: #{tpu_custom_call.1} parent=19 // pred_region
          %s136 = sand.u32 %s37, 1
          %s137 = scalar_lea.sflag [#allocation3], %s136
          %s138 = sand.u32 %s37, 1
          %s139 = smul.addr %s138, 19
          %s140 = scalar_lea.vmem [#allocation2], %s139
          %142 = vsyncadd %s137, 0
          %s143 = smul.addr %s22, 19
          %s144 = scalar_lea.hbm %s0, %s143
          %s146 = sshll.u32 %s144, 4
          %s147 = int_to_ptr.hbm [resolvable:$true] %s146
          %s148 = sshll.u32 %s140, 4
          %s149 = int_to_ptr.vmem [resolvable:$true] %s148
          %151 = dma.hbm_to_vmem [thread:$0]  %s147, 304, %s149, %s137
        $region24: #{tpu_custom_call.1} parent=19 // pred_fallthru
          _
      $region20: #{tpu_custom_call.1} parent=5 // pred_fallthru
        _
      %p152 = scmp.le.s32.totalorder 1, %s15
      %p153 = scmp.lt.s32.totalorder %s15, 5
      %p154 = pnand %p152, %p153
      %p155 = pneg %p154
      // Predicated region
      $region25: #{tpu_custom_call.1} parent=5 // pred_check
        _
      $region26: #{tpu_custom_call.1} parent=5 // pred_check_branch
        %157 = sbr.rel (%p154) target = $region28
      $region27: #{tpu_custom_call.1} parent=5 // pred_region
        %s158 = ssub.s32 %s15, 1
        %s159 = sand.u32 %s40, 1
        %s160 = scalar_lea.sflag [#allocation3], %s159
        %s161 = sand.u32 %s40, 1
        %s162 = smul.addr %s161, 19
        %s163 = scalar_lea.vmem [#allocation2], %s162
        // Predicated region
        $region29: #{tpu_custom_call.1} parent=27 // pred_check
          %p164 = pneg %p53
        $region30: #{tpu_custom_call.1} parent=27 // pred_check_branch
          %166 = sbr.rel (%p164) target = $region32
        $region31: #{tpu_custom_call.1} parent=27 // pred_region
          %168 = dma.done %s160, 304
        $region32: #{tpu_custom_call.1} parent=27 // pred_fallthru
          _
        // Predicated region
        $region33: #{tpu_custom_call.1} parent=27 // pred_check
          %p169 = pneg %p74
        $region34: #{tpu_custom_call.1} parent=27 // pred_check_branch
          %171 = sbr.rel (%p169) target = $region36
        $region35: #{tpu_custom_call.1} parent=27 // pred_region
          %173 = dma.done [#allocation6], 128
        $region36: #{tpu_custom_call.1} parent=27 // pred_fallthru
          _
        %s174 = sand.u32 %s40, 1
        %s175 = scalar_lea.sflag [#allocation3], %s174
        %s176 = sand.u32 %s40, 1
        %s177 = smul.addr %s176, 19
        %s178 = scalar_lea.vmem [#allocation2], %s177
        %p179 = pneg %p53
        %p180 = pneg %p50
        %p181 = pneg %p74
        %p182 = pneg %p71
        %p183 = pneg %p102
        %p184 = pneg %p99
        %s185 = sand.u32 %s89, 1
        %s186 = scalar_lea.sflag [#allocation4], %s185
        %s187 = sand.u32 %s89, 1
        %s188 = smul.addr %s187, 72
        %s189 = scalar_lea.vmem [#allocation7], %s188
        %s190 = smul.u32 9, %s25
        %s191 = smul.u32 %s25, 1152
        %v192 = vld [vmem:[#allocation5] sm:$0xff]
        %s193 = sshra.s32 %s191, 7
        %s194 = sand.u32 %s191, 127
        %s195 = scalar_lea.vmem %s163, %s193 [#allocation2]
        %v196 = vld [vmem:[%s195] sm:$0xff]
        %v197 = vld [vmem:[%s195 + $0x8] sm:$0x3]
        %199 = vset.pattern.permute.xlu0 0
        %200 = vperm.xlu0 %199, %v192
        %v201 = vpop.permute.xlu0 %200
        %v205 = vperm.slane %v196, 0
        %v206 = vperm.slane %v196, 1
        %v207 = vperm.slane %v196, 2
        %v208 = vperm.slane %v196, 3
        %v209 = vperm.slane %v196, 4
        %v210 = vperm.slane %v196, 5
        %v211 = vperm.slane %v196, 6
        %v212 = vperm.slane %v196, 7
        %v213 = vperm.slane %v197, 0
        %v223 = vmul.f32 %v201, %v205
        %v224 = vmul.f32 %v201, %v206
        %v225 = vmul.f32 %v201, %v207
        %v226 = vmul.f32 %v201, %v208
        %v227 = vmul.f32 %v201, %v209
        %v228 = vmul.f32 %v201, %v210
        %v229 = vmul.f32 %v201, %v211
        %v230 = vmul.f32 %v201, %v212
        %v231 = vmul.f32 %v201, %v213
        %v232 = vadd.f32 %v223, 0.0
        %v233 = vadd.f32 %v224, 0.0
        %v234 = vadd.f32 %v225, 0.0
        %v235 = vadd.f32 %v226, 0.0
        %v236 = vadd.f32 %v227, 0.0
        %v237 = vadd.f32 %v228, 0.0
        %v238 = vadd.f32 %v229, 0.0
        %v239 = vadd.f32 %v230, 0.0
        %v240 = vadd.f32 %v231, 0.0
        %241 = vset.pattern.permute.xlu0 1
        %242 = vperm.xlu0 %241, %v192
        %v243 = vpop.permute.xlu0 %242
        %v245 = vperm.slane %v197, 1
        %v247 = vmul.f32 %v243, %v205
        %v248 = vmul.f32 %v243, %v206
        %v249 = vmul.f32 %v243, %v207
        %v250 = vmul.f32 %v243, %v208
        %v251 = vmul.f32 %v243, %v209
        %v252 = vmul.f32 %v243, %v210
        %v253 = vmul.f32 %v243, %v211
        %v254 = vmul.f32 %v243, %v212
        %v255 = vmul.f32 %v243, %v213
        %v256 = vmul.f32 %v243, %v245
        %267 = vrot.lane.b32.xlu0 %v247, 127
        %v268 = vpop.permute.xlu0 %267
        %269 = vrot.lane.b32.xlu0 %v248, 127
        %v270 = vpop.permute.xlu0 %269
        %271 = vrot.lane.b32.xlu0 %v249, 127
        %v272 = vpop.permute.xlu0 %271
        %273 = vrot.lane.b32.xlu0 %v250, 127
        %v274 = vpop.permute.xlu0 %273
        %275 = vrot.lane.b32.xlu0 %v251, 127
        %v276 = vpop.permute.xlu0 %275
        %277 = vrot.lane.b32.xlu0 %v252, 127
        %v278 = vpop.permute.xlu0 %277
        %279 = vrot.lane.b32.xlu0 %v253, 127
        %v280 = vpop.permute.xlu0 %279
        %281 = vrot.lane.b32.xlu0 %v254, 127
        %v282 = vpop.permute.xlu0 %281
        %283 = vrot.lane.b32.xlu0 %v255, 127
        %v284 = vpop.permute.xlu0 %283
        %285 = vrot.lane.b32.xlu0 %v256, 127
        %v286 = vpop.permute.xlu0 %285
        %vm287 = vcmask 1039360
        %v288 = vsel %vm287, %v268, %v270
        %v289 = vsel %vm287, %v270, %v272
        %v290 = vsel %vm287, %v272, %v274
        %v291 = vsel %vm287, %v274, %v276
        %v292 = vsel %vm287, %v276, %v278
        %v293 = vsel %vm287, %v278, %v280
        %v294 = vsel %vm287, %v280, %v282
        %v295 = vsel %vm287, %v282, %v284
        %v296 = vsel %vm287, %v284, %v286
        %v306 = vadd.f32 %v232, %v288
        %v307 = vadd.f32 %v233, %v289
        %v308 = vadd.f32 %v234, %v290
        %v309 = vadd.f32 %v235, %v291
        %v310 = vadd.f32 %v236, %v292
        %v311 = vadd.f32 %v237, %v293
        %v312 = vadd.f32 %v238, %v294
        %v313 = vadd.f32 %v239, %v295
        %v314 = vadd.f32 %v240, %v296
        %315 = vset.pattern.permute.xlu0 2
        %316 = vperm.xlu0 %315, %v192
        %v317 = vpop.permute.xlu0 %316
        %v319 = vmul.f32 %v317, %v205
        %v320 = vmul.f32 %v317, %v206
        %v321 = vmul.f32 %v317, %v207
        %v322 = vmul.f32 %v317, %v208
        %v323 = vmul.f32 %v317, %v209
        %v324 = vmul.f32 %v317, %v210
        %v325 = vmul.f32 %v317, %v211
        %v326 = vmul.f32 %v317, %v212
        %v327 = vmul.f32 %v317, %v213
        %v328 = vmul.f32 %v317, %v245
        %339 = vrot.lane.b32.xlu0 %v319, 126
        %v340 = vpop.permute.xlu0 %339
        %341 = vrot.lane.b32.xlu0 %v320, 126
        %v342 = vpop.permute.xlu0 %341
        %343 = vrot.lane.b32.xlu0 %v321, 126
        %v344 = vpop.permute.xlu0 %343
        %345 = vrot.lane.b32.xlu0 %v322, 126
        %v346 = vpop.permute.xlu0 %345
        %347 = vrot.lane.b32.xlu0 %v323, 126
        %v348 = vpop.permute.xlu0 %347
        %349 = vrot.lane.b32.xlu0 %v324, 126
        %v350 = vpop.permute.xlu0 %349
        %351 = vrot.lane.b32.xlu0 %v325, 126
        %v352 = vpop.permute.xlu0 %351
        %353 = vrot.lane.b32.xlu0 %v326, 126
        %v354 = vpop.permute.xlu0 %353
        %355 = vrot.lane.b32.xlu0 %v327, 126
        %v356 = vpop.permute.xlu0 %355
        %357 = vrot.lane.b32.xlu0 %v328, 126
        %v358 = vpop.permute.xlu0 %357
        %vm359 = vcmask 1031168
        %v360 = vsel %vm359, %v340, %v342
        %v361 = vsel %vm359, %v342, %v344
        %v362 = vsel %vm359, %v344, %v346
        %v363 = vsel %vm359, %v346, %v348
        %v364 = vsel %vm359, %v348, %v350
        %v365 = vsel %vm359, %v350, %v352
        %v366 = vsel %vm359, %v352, %v354
        %v367 = vsel %vm359, %v354, %v356
        %v368 = vsel %vm359, %v356, %v358
        %v378 = vadd.f32 %v306, %v360
        %v379 = vadd.f32 %v307, %v361
        %v380 = vadd.f32 %v308, %v362
        %v381 = vadd.f32 %v309, %v363
        %v382 = vadd.f32 %v310, %v364
        %v383 = vadd.f32 %v311, %v365
        %v384 = vadd.f32 %v312, %v366
        %v385 = vadd.f32 %v313, %v367
        %v386 = vadd.f32 %v314, %v368
        %387 = vset.pattern.permute.xlu0 3
        %388 = vperm.xlu0 %387, %v192
        %v389 = vpop.permute.xlu0 %388
        %v391 = vmul.f32 %v389, %v205
        %v392 = vmul.f32 %v389, %v206
        %v393 = vmul.f32 %v389, %v207
        %v394 = vmul.f32 %v389, %v208
        %v395 = vmul.f32 %v389, %v209
        %v396 = vmul.f32 %v389, %v210
        %v397 = vmul.f32 %v389, %v211
        %v398 = vmul.f32 %v389, %v212
        %v399 = vmul.f32 %v389, %v213
        %v400 = vmul.f32 %v389, %v245
        %411 = vrot.lane.b32.xlu0 %v391, 125
        %v412 = vpop.permute.xlu0 %411
        %413 = vrot.lane.b32.xlu0 %v392, 125
        %v414 = vpop.permute.xlu0 %413
        %415 = vrot.lane.b32.xlu0 %v393, 125
        %v416 = vpop.permute.xlu0 %415
        %417 = vrot.lane.b32.xlu0 %v394, 125
        %v418 = vpop.permute.xlu0 %417
        %419 = vrot.lane.b32.xlu0 %v395, 125
        %v420 = vpop.permute.xlu0 %419
        %421 = vrot.lane.b32.xlu0 %v396, 125
        %v422 = vpop.permute.xlu0 %421
        %423 = vrot.lane.b32.xlu0 %v397, 125
        %v424 = vpop.permute.xlu0 %423
        %425 = vrot.lane.b32.xlu0 %v398, 125
        %v426 = vpop.permute.xlu0 %425
        %427 = vrot.lane.b32.xlu0 %v399, 125
        %v428 = vpop.permute.xlu0 %427
        %429 = vrot.lane.b32.xlu0 %v400, 125
        %v430 = vpop.permute.xlu0 %429
        %vm431 = vcmask 1022976
        %v432 = vsel %vm431, %v412, %v414
        %v433 = vsel %vm431, %v414, %v416
        %v434 = vsel %vm431, %v416, %v418
        %v435 = vsel %vm431, %v418, %v420
        %v436 = vsel %vm431, %v420, %v422
        %v437 = vsel %vm431, %v422, %v424
        %v438 = vsel %vm431, %v424, %v426
        %v439 = vsel %vm431, %v426, %v428
        %v440 = vsel %vm431, %v428, %v430
        %v450 = vadd.f32 %v378, %v432
        %v451 = vadd.f32 %v379, %v433
        %v452 = vadd.f32 %v380, %v434
        %v453 = vadd.f32 %v381, %v435
        %v454 = vadd.f32 %v382, %v436
        %v455 = vadd.f32 %v383, %v437
        %v456 = vadd.f32 %v384, %v438
        %v457 = vadd.f32 %v385, %v439
        %v458 = vadd.f32 %v386, %v440
        %459 = vset.pattern.permute.xlu0 4
        %460 = vperm.xlu0 %459, %v192
        %v461 = vpop.permute.xlu0 %460
        %v463 = vmul.f32 %v461, %v205
        %v464 = vmul.f32 %v461, %v206
        %v465 = vmul.f32 %v461, %v207
        %v466 = vmul.f32 %v461, %v208
        %v467 = vmul.f32 %v461, %v209
        %v468 = vmul.f32 %v461, %v210
        %v469 = vmul.f32 %v461, %v211
        %v470 = vmul.f32 %v461, %v212
        %v471 = vmul.f32 %v461, %v213
        %v472 = vmul.f32 %v461, %v245
        %483 = vrot.lane.b32.xlu0 %v463, 124
        %v484 = vpop.permute.xlu0 %483
        %485 = vrot.lane.b32.xlu0 %v464, 124
        %v486 = vpop.permute.xlu0 %485
        %487 = vrot.lane.b32.xlu0 %v465, 124
        %v488 = vpop.permute.xlu0 %487
        %489 = vrot.lane.b32.xlu0 %v466, 124
        %v490 = vpop.permute.xlu0 %489
        %491 = vrot.lane.b32.xlu0 %v467, 124
        %v492 = vpop.permute.xlu0 %491
        %493 = vrot.lane.b32.xlu0 %v468, 124
        %v494 = vpop.permute.xlu0 %493
        %495 = vrot.lane.b32.xlu0 %v469, 124
        %v496 = vpop.permute.xlu0 %495
        %497 = vrot.lane.b32.xlu0 %v470, 124
        %v498 = vpop.permute.xlu0 %497
        %499 = vrot.lane.b32.xlu0 %v471, 124
        %v500 = vpop.permute.xlu0 %499
        %501 = vrot.lane.b32.xlu0 %v472, 124
        %v502 = vpop.permute.xlu0 %501
        %vm503 = vcmask 1014784
        %v504 = vsel %vm503, %v484, %v486
        %v505 = vsel %vm503, %v486, %v488
        %v506 = vsel %vm503, %v488, %v490
        %v507 = vsel %vm503, %v490, %v492
        %v508 = vsel %vm503, %v492, %v494
        %v509 = vsel %vm503, %v494, %v496
        %v510 = vsel %vm503, %v496, %v498
        %v511 = vsel %vm503, %v498, %v500
        %v512 = vsel %vm503, %v500, %v502
        %v522 = vadd.f32 %v450, %v504
        %v523 = vadd.f32 %v451, %v505
        %v524 = vadd.f32 %v452, %v506
        %v525 = vadd.f32 %v453, %v507
        %v526 = vadd.f32 %v454, %v508
        %v527 = vadd.f32 %v455, %v509
        %v528 = vadd.f32 %v456, %v510
        %v529 = vadd.f32 %v457, %v511
        %v530 = vadd.f32 %v458, %v512
        %531 = vset.pattern.permute.xlu0 5
        %532 = vperm.xlu0 %531, %v192
        %v533 = vpop.permute.xlu0 %532
        %v535 = vmul.f32 %v533, %v205
        %v536 = vmul.f32 %v533, %v206
        %v537 = vmul.f32 %v533, %v207
        %v538 = vmul.f32 %v533, %v208
        %v539 = vmul.f32 %v533, %v209
        %v540 = vmul.f32 %v533, %v210
        %v541 = vmul.f32 %v533, %v211
        %v542 = vmul.f32 %v533, %v212
        %v543 = vmul.f32 %v533, %v213
        %v544 = vmul.f32 %v533, %v245
        %555 = vrot.lane.b32.xlu0 %v535, 123
        %v556 = vpop.permute.xlu0 %555
        %557 = vrot.lane.b32.xlu0 %v536, 123
        %v558 = vpop.permute.xlu0 %557
        %559 = vrot.lane.b32.xlu0 %v537, 123
        %v560 = vpop.permute.xlu0 %559
        %561 = vrot.lane.b32.xlu0 %v538, 123
        %v562 = vpop.permute.xlu0 %561
        %563 = vrot.lane.b32.xlu0 %v539, 123
        %v564 = vpop.permute.xlu0 %563
        %565 = vrot.lane.b32.xlu0 %v540, 123
        %v566 = vpop.permute.xlu0 %565
        %567 = vrot.lane.b32.xlu0 %v541, 123
        %v568 = vpop.permute.xlu0 %567
        %569 = vrot.lane.b32.xlu0 %v542, 123
        %v570 = vpop.permute.xlu0 %569
        %571 = vrot.lane.b32.xlu0 %v543, 123
        %v572 = vpop.permute.xlu0 %571
        %573 = vrot.lane.b32.xlu0 %v544, 123
        %v574 = vpop.permute.xlu0 %573
        %vm575 = vcmask 1006592
        %v576 = vsel %vm575, %v556, %v558
        %v577 = vsel %vm575, %v558, %v560
        %v578 = vsel %vm575, %v560, %v562
        %v579 = vsel %vm575, %v562, %v564
        %v580 = vsel %vm575, %v564, %v566
        %v581 = vsel %vm575, %v566, %v568
        %v582 = vsel %vm575, %v568, %v570
        %v583 = vsel %vm575, %v570, %v572
        %v584 = vsel %vm575, %v572, %v574
        %v594 = vadd.f32 %v522, %v576
        %v595 = vadd.f32 %v523, %v577
        %v596 = vadd.f32 %v524, %v578
        %v597 = vadd.f32 %v525, %v579
        %v598 = vadd.f32 %v526, %v580
        %v599 = vadd.f32 %v527, %v581
        %v600 = vadd.f32 %v528, %v582
        %v601 = vadd.f32 %v529, %v583
        %v602 = vadd.f32 %v530, %v584
        %603 = vset.pattern.permute.xlu0 6
        %604 = vperm.xlu0 %603, %v192
        %v605 = vpop.permute.xlu0 %604
        %v607 = vmul.f32 %v605, %v205
        %v608 = vmul.f32 %v605, %v206
        %v609 = vmul.f32 %v605, %v207
        %v610 = vmul.f32 %v605, %v208
        %v611 = vmul.f32 %v605, %v209
        %v612 = vmul.f32 %v605, %v210
        %v613 = vmul.f32 %v605, %v211
        %v614 = vmul.f32 %v605, %v212
        %v615 = vmul.f32 %v605, %v213
        %v616 = vmul.f32 %v605, %v245
        %627 = vrot.lane.b32.xlu0 %v607, 122
        %v628 = vpop.permute.xlu0 %627
        %629 = vrot.lane.b32.xlu0 %v608, 122
        %v630 = vpop.permute.xlu0 %629
        %631 = vrot.lane.b32.xlu0 %v609, 122
        %v632 = vpop.permute.xlu0 %631
        %633 = vrot.lane.b32.xlu0 %v610, 122
        %v634 = vpop.permute.xlu0 %633
        %635 = vrot.lane.b32.xlu0 %v611, 122
        %v636 = vpop.permute.xlu0 %635
        %637 = vrot.lane.b32.xlu0 %v612, 122
        %v638 = vpop.permute.xlu0 %637
        %639 = vrot.lane.b32.xlu0 %v613, 122
        %v640 = vpop.permute.xlu0 %639
        %641 = vrot.lane.b32.xlu0 %v614, 122
        %v642 = vpop.permute.xlu0 %641
        %643 = vrot.lane.b32.xlu0 %v615, 122
        %v644 = vpop.permute.xlu0 %643
        %645 = vrot.lane.b32.xlu0 %v616, 122
        %v646 = vpop.permute.xlu0 %645
        %vm647 = vcmask 998400
        %v648 = vsel %vm647, %v628, %v630
        %v649 = vsel %vm647, %v630, %v632
        %v650 = vsel %vm647, %v632, %v634
        %v651 = vsel %vm647, %v634, %v636
        %v652 = vsel %vm647, %v636, %v638
        %v653 = vsel %vm647, %v638, %v640
        %v654 = vsel %vm647, %v640, %v642
        %v655 = vsel %vm647, %v642, %v644
        %v656 = vsel %vm647, %v644, %v646
        %v666 = vadd.f32 %v594, %v648
        %v667 = vadd.f32 %v595, %v649
        %v668 = vadd.f32 %v596, %v650
        %v669 = vadd.f32 %v597, %v651
        %v670 = vadd.f32 %v598, %v652
        %v671 = vadd.f32 %v599, %v653
        %v672 = vadd.f32 %v600, %v654
        %v673 = vadd.f32 %v601, %v655
        %v674 = vadd.f32 %v602, %v656
        %675 = vset.pattern.permute.xlu0 7
        %676 = vperm.xlu0 %675, %v192
        %v677 = vpop.permute.xlu0 %676
        %v679 = vmul.f32 %v677, %v205
        %v680 = vmul.f32 %v677, %v206
        %v681 = vmul.f32 %v677, %v207
        %v682 = vmul.f32 %v677, %v208
        %v683 = vmul.f32 %v677, %v209
        %v684 = vmul.f32 %v677, %v210
        %v685 = vmul.f32 %v677, %v211
        %v686 = vmul.f32 %v677, %v212
        %v687 = vmul.f32 %v677, %v213
        %v688 = vmul.f32 %v677, %v245
        %699 = vrot.lane.b32.xlu0 %v679, 121
        %v700 = vpop.permute.xlu0 %699
        %701 = vrot.lane.b32.xlu0 %v680, 121
        %v702 = vpop.permute.xlu0 %701
        %703 = vrot.lane.b32.xlu0 %v681, 121
        %v704 = vpop.permute.xlu0 %703
        %705 = vrot.lane.b32.xlu0 %v682, 121
        %v706 = vpop.permute.xlu0 %705
        %707 = vrot.lane.b32.xlu0 %v683, 121
        %v708 = vpop.permute.xlu0 %707
        %709 = vrot.lane.b32.xlu0 %v684, 121
        %v710 = vpop.permute.xlu0 %709
        %711 = vrot.lane.b32.xlu0 %v685, 121
        %v712 = vpop.permute.xlu0 %711
        %713 = vrot.lane.b32.xlu0 %v686, 121
        %v714 = vpop.permute.xlu0 %713
        %715 = vrot.lane.b32.xlu0 %v687, 121
        %v716 = vpop.permute.xlu0 %715
        %717 = vrot.lane.b32.xlu0 %v688, 121
        %v718 = vpop.permute.xlu0 %717
        %vm719 = vcmask 990208
        %v720 = vsel %vm719, %v700, %v702
        %v721 = vsel %vm719, %v702, %v704
        %v722 = vsel %vm719, %v704, %v706
        %v723 = vsel %vm719, %v706, %v708
        %v724 = vsel %vm719, %v708, %v710
        %v725 = vsel %vm719, %v710, %v712
        %v726 = vsel %vm719, %v712, %v714
        %v727 = vsel %vm719, %v714, %v716
        %v728 = vsel %vm719, %v716, %v718
        %v738 = vadd.f32 %v666, %v720
        %v739 = vadd.f32 %v667, %v721
        %v740 = vadd.f32 %v668, %v722
        %v741 = vadd.f32 %v669, %v723
        %v742 = vadd.f32 %v670, %v724
        %v743 = vadd.f32 %v671, %v725
        %v744 = vadd.f32 %v672, %v726
        %v745 = vadd.f32 %v673, %v727
        %v746 = vadd.f32 %v674, %v728
        %747 = vset.pattern.permute.xlu0 8
        %748 = vperm.xlu0 %747, %v192
        %v749 = vpop.permute.xlu0 %748
        %v751 = vmul.f32 %v749, %v205
        %v752 = vmul.f32 %v749, %v206
        %v753 = vmul.f32 %v749, %v207
        %v754 = vmul.f32 %v749, %v208
        %v755 = vmul.f32 %v749, %v209
        %v756 = vmul.f32 %v749, %v210
        %v757 = vmul.f32 %v749, %v211
        %v758 = vmul.f32 %v749, %v212
        %v759 = vmul.f32 %v749, %v213
        %v760 = vmul.f32 %v749, %v245
        %771 = vrot.lane.b32.xlu0 %v751, 120
        %v772 = vpop.permute.xlu0 %771
        %773 = vrot.lane.b32.xlu0 %v752, 120
        %v774 = vpop.permute.xlu0 %773
        %775 = vrot.lane.b32.xlu0 %v753, 120
        %v776 = vpop.permute.xlu0 %775
        %777 = vrot.lane.b32.xlu0 %v754, 120
        %v778 = vpop.permute.xlu0 %777
        %779 = vrot.lane.b32.xlu0 %v755, 120
        %v780 = vpop.permute.xlu0 %779
        %781 = vrot.lane.b32.xlu0 %v756, 120
        %v782 = vpop.permute.xlu0 %781
        %783 = vrot.lane.b32.xlu0 %v757, 120
        %v784 = vpop.permute.xlu0 %783
        %785 = vrot.lane.b32.xlu0 %v758, 120
        %v786 = vpop.permute.xlu0 %785
        %787 = vrot.lane.b32.xlu0 %v759, 120
        %v788 = vpop.permute.xlu0 %787
        %789 = vrot.lane.b32.xlu0 %v760, 120
        %v790 = vpop.permute.xlu0 %789
        %vm791 = vcmask 982016
        %v792 = vsel %vm791, %v772, %v774
        %v793 = vsel %vm791, %v774, %v776
        %v794 = vsel %vm791, %v776, %v778
        %v795 = vsel %vm791, %v778, %v780
        %v796 = vsel %vm791, %v780, %v782
        %v797 = vsel %vm791, %v782, %v784
        %v798 = vsel %vm791, %v784, %v786
        %v799 = vsel %vm791, %v786, %v788
        %v800 = vsel %vm791, %v788, %v790
        %v810 = vadd.f32 %v738, %v792
        %v811 = vadd.f32 %v739, %v793
        %v812 = vadd.f32 %v740, %v794
        %v813 = vadd.f32 %v741, %v795
        %v814 = vadd.f32 %v742, %v796
        %v815 = vadd.f32 %v743, %v797
        %v816 = vadd.f32 %v744, %v798
        %v817 = vadd.f32 %v745, %v799
        %v818 = vadd.f32 %v746, %v800
        %819 = vst [vmem:[%s189] sm:$0xff] %v810
        %820 = vst [vmem:[%s189 + $0x8] sm:$0xff] %v811
        %821 = vst [vmem:[%s189 + $0x10] sm:$0xff] %v812
        %822 = vst [vmem:[%s189 + $0x18] sm:$0xff] %v813
        %823 = vst [vmem:[%s189 + $0x20] sm:$0xff] %v814
        %824 = vst [vmem:[%s189 + $0x28] sm:$0xff] %v815
        %825 = vst [vmem:[%s189 + $0x30] sm:$0xff] %v816
        %826 = vst [vmem:[%s189 + $0x38] sm:$0xff] %v817
        %827 = vst [vmem:[%s189 + $0x40] sm:$0xff] %v818
        %s828 = sand.u32 %s89, 1
        %s829 = scalar_lea.sflag [#allocation4], %s828
        %s830 = sand.u32 %s89, 1
        %s831 = smul.addr %s830, 72
        %s832 = scalar_lea.vmem [#allocation7], %s831
        // Predicated region
        $region37: #{tpu_custom_call.1} parent=27 // pred_check
          %p833 = pneg %p99
        $region38: #{tpu_custom_call.1} parent=27 // pred_check_branch
          %835 = sbr.rel (%p833) target = $region40
        $region39: #{tpu_custom_call.1} parent=27 // pred_region
          %s836 = smul.u32 9, %s25
          %838 = vsyncadd %s829, 0
          %s839 = smul.addr %s24, 18
          %s840 = sadd.s32 %s836, %s839
          %s841 = smul.addr %s840, 8
          %s842 = scalar_lea.hbm %s2, %s841
          %s844 = sshll.u32 %s832, 4
          %s845 = int_to_ptr.vmem [resolvable:$true] %s844
          %s846 = sshll.u32 %s842, 4
          %s847 = int_to_ptr.hbm [resolvable:$true] %s846
          %849 = dma.vmem_to_hbm [thread:$0]  %s845, 1152, %s847, %s829
        $region40: #{tpu_custom_call.1} parent=27 // pred_fallthru
          _
      $region28: #{tpu_custom_call.1} parent=5 // pred_fallthru
        _
      %p850 = scmp.le.s32.totalorder 2, %s15
      // Predicated region
      $region41: #{tpu_custom_call.1} parent=5 // pred_check
        %p851 = pneg %p850
      $region42: #{tpu_custom_call.1} parent=5 // pred_check_branch
        %853 = sbr.rel (%p851) target = $region44
      $region43: #{tpu_custom_call.1} parent=5 // pred_region
        %s854 = ssub.s32 %s15, 2
        // Predicated region
        $region45: #{tpu_custom_call.1} parent=43 // pred_check
          %p855 = pneg %p105
        $region46: #{tpu_custom_call.1} parent=43 // pred_check_branch
          %857 = sbr.rel (%p855) target = $region48
        $region47: #{tpu_custom_call.1} parent=43 // pred_region
          %s858 = sand.u32 %s90, 1
          %s859 = scalar_lea.sflag [#allocation4], %s858
          %s860 = sand.u32 %s90, 1
          %s861 = smul.addr %s860, 72
          %s862 = scalar_lea.vmem [#allocation7], %s861
          %864 = dma.done %s859, 1152
        $region48: #{tpu_custom_call.1} parent=43 // pred_fallthru
          _
      $region44: #{tpu_custom_call.1} parent=5 // pred_fallthru
        _
    $region6: #{tpu_custom_call.1} parent=1 // loop_footer
      %s19 = sadd.s32 1, %s15
    $region7: #{tpu_custom_call.1} parent=1 // loop_footer_branch
      %14 = sbr.rel target = $region3
    $region8: #{tpu_custom_call.1} parent=1 // loop_exit
      _
    %865 = vsyncpa [#allocation3], 1
    %s866 = scalar_lea.sflag [#allocation3], 1
    %867 = vsyncpa %s866, 1
    %868 = vsyncpa [#allocation6], 1
    %869 = vsyncpa [#allocation4], 1
    %s870 = scalar_lea.sflag [#allocation4], 1
    %871 = vsyncpa %s870, 1

</llo_original>
